<compile_context>
chip_gen: v7x
topology: tpu7x:2x2x1
jax: 0.10.0
libtpu: 0.0.40
codegen_flags: <defaults>
</compile_context>

<pallas_src>
import functools

import jax
import jax.numpy as jnp
from jax import lax
from jax.experimental import pallas as pl
from jax.experimental.pallas import tpu as pltpu

_LANE = 128           # TPU vreg lane count
_CHUNK = 4 * _LANE    # lanes processed per fori_loop iteration (4 lane-tiles)


def _tpu_defaults():
    """Returns (n_parallel, block_bytes, vmem_cap_bytes) per TPU generation."""
    kind = ""
    try:
        kind = jax.devices()[0].device_kind.lower()
    except Exception:
        pass
    if "v7" in kind or "7x" in kind:
        # 2 TensorCores/chip, 64 MiB VMEM/TC, ~3.2 TB/s HBM.
        return 2, 8 * 1024 * 1024, 48 * 1024 * 1024
    if "v6" in kind:
        # 1 TensorCore, 128 MiB VMEM, ~1.4 TB/s HBM.
        return 1, 4 * 1024 * 1024, 100 * 1024 * 1024
    # v5e and unknown: 1 TensorCore, conservative blocks, explicit VMEM limit.
    return 1, 2 * 1024 * 1024, 100 * 1024 * 1024


def _complex_mse_kernel(x_ref, y_ref, out_ref, acc_ref, *,
                        y_len, tc, n_inner, inv_den):
    """x_ref/y_ref: (X, tc) native-dtype input blocks.
    out_ref: (1, 1, 128) f32 per-outer partial row. acc_ref: (X, _CHUNK) f32."""
    o = pl.program_id(0)          # parallel outer axis (megacore on v7x)
    i = pl.program_id(1)          # reduction axis over column blocks

    @pl.when(i == 0)
    def _():
        acc_ref[...] = jnp.zeros_like(acc_ref)

    # Raw (unclamped) column-block id. Grid-padding blocks (when n_outer does
    # not divide the block count) land past the array: limit0 <= 0, so the
    # mask below zeroes their whole contribution (the index_map clamps the
    # actual DMA in-bounds).
    cb = o * n_inner + i
    limit0 = y_len - cb * tc      # valid lanes remaining from this block's col 0

    shape = acc_ref.shape                                   # (X, _CHUNK)
    lane = lax.broadcasted_iota(jnp.int32, shape, 1)        # hoisted once
    n_chunks = tc // _CHUNK

    def body(j, carry):
        start = pl.multiple_of(j * _CHUNK, _CHUNK)
        xv = x_ref[:, pl.ds(start, _CHUNK)].astype(jnp.float32)
        yv = y_ref[:, pl.ds(start, _CHUNK)].astype(jnp.float32)
        valid = lane < (limit0 - j * _CHUNK)
        d = jnp.where(valid, xv - yv, 0.0)   # mask BEFORE squaring (garbage-safe)
        return carry + d * d

    carry = lax.fori_loop(0, n_chunks, body,
                          jnp.zeros(shape, jnp.float32),
                          unroll=min(n_chunks, 4))
    acc_ref[...] += carry

    @pl.when(i == n_inner - 1)
    def _():
        a = acc_ref[...]                                    # (X, _CHUNK) f32
        r = a[:, 0:_LANE]
        for t in range(1, _CHUNK // _LANE):                 # few vreg adds
            r = r + a[:, t * _LANE:(t + 1) * _LANE]
        row = jnp.sum(r, axis=0, keepdims=True) * inv_den   # (1, 128)
        out_ref[0] = row


def complex_mse_loss(csi_est, csi_label, *, block_bytes=None, n_parallel=None):
    """Mean over (batch, csi_matrix) of |est - label|^2 (complex as last dim 2)."""
    B, M, two = csi_est.shape
    assert two == 2 and csi_label.shape == csi_est.shape
    n = B * M * 2

    dev_parallel, dev_block_bytes, vmem_cap = _tpu_defaults()
    if block_bytes is None:
        block_bytes = dev_block_bytes
    if n_parallel is None:
        n_parallel = dev_parallel

    itemsize = jnp.dtype(csi_est.dtype).itemsize
    # Sublane-dense, copy-free (X, Y) view of the flat data. X = largest native
    # sublane count that divides n (16 for 2-byte dtypes, 8 for 4-byte, ...).
    sub_target = max(8, 32 // max(1, itemsize))
    X = 2                                     # n = 2*B*M is always even
    for cand in (sub_target, 16, 8, 4, 2):
        if n % cand == 0:
            X = cand
            break
    Y = n // X

    # Columns per block: multiple of _CHUNK, ~block_bytes per input, no bigger
    # than the (chunk-rounded) problem itself.
    chunks_per_block = int(max(1, min(block_bytes // (X * _CHUNK * itemsize),
                                      pl.cdiv(Y, _CHUNK))))
    tc = chunks_per_block * _CHUNK
    n_c = pl.cdiv(Y, tc)                      # total column blocks

    n_outer = n_parallel if (n_parallel > 1 and n_c >= n_parallel) else 1
    n_inner = pl.cdiv(n_c, n_outer)

    x2 = csi_est.reshape(X, Y)                # contiguous regroup: no HBM copy
    y2 = csi_label.reshape(X, Y)

    def in_map(o, i):
        # Clamp so grid-padding blocks DMA an in-bounds (already-read) block;
        # the in-kernel mask zeroes their contribution.
        return (0, jnp.minimum(o * n_inner + i, n_c - 1))

    in_spec = pl.BlockSpec((X, tc), in_map)
    out_spec = pl.BlockSpec((1, 1, _LANE), lambda o, i: (o, 0, 0))

    kernel = functools.partial(
        _complex_mse_kernel,
        y_len=Y, tc=tc, n_inner=n_inner, inv_den=1.0 / float(B * M))

    # 2 inputs x 2 pipeline buffers x one block, plus accumulator/output slack;
    # capped per generation (v7x has only 64 MiB physical VMEM per core).
    block_in_bytes = X * tc * itemsize
    vmem_limit = int(min(max(4 * block_in_bytes + (4 << 20), 16 << 20), vmem_cap))

    partial_rows = pl.pallas_call(
        kernel,
        out_shape=jax.ShapeDtypeStruct((n_outer, 1, _LANE), jnp.float32),
        grid_spec=pltpu.PrefetchScalarGridSpec(
            num_scalar_prefetch=0,
            grid=(n_outer, n_inner),
            in_specs=[in_spec, in_spec],
            out_specs=out_spec,
            scratch_shapes=[pltpu.VMEM((X, _CHUNK), jnp.float32)],
        ),
        compiler_params=pltpu.CompilerParams(
            dimension_semantics=("parallel", "arbitrary"),
            vmem_limit_bytes=vmem_limit,
        ),
    )(x2, y2)

    # 1/(B*M) is folded into the kernel; only a tiny (n_outer*128,) sum remains.
    return jnp.sum(partial_rows)


def _reference(csi_est, csi_label):
    diff = csi_est.astype(jnp.float32) - csi_label.astype(jnp.float32)
    return jnp.mean(jnp.square(jnp.sqrt(jnp.square(diff[..., 0]) +
                                        jnp.square(diff[..., 1]))))


if __name__ == "__main__":
    key = jax.random.PRNGKey(0)
    ks = jax.random.split(key, 8)

    # Case 1: nominal module shape (B=2, M=256), f32, single block.
    B, M = 2, 256
    est = jax.random.normal(ks[0], (B, M, 2), dtype=jnp.float32)
    lab = jax.random.normal(ks[1], (B, M, 2), dtype=jnp.float32)
    loss = jax.block_until_ready(complex_mse_loss(est, lab))
    ref = _reference(est, lab)
    assert jnp.allclose(loss, ref, rtol=1e-5, atol=1e-6), (loss, ref)

    # Case 2: ragged lane tail + 2-way parallel outer axis (even split).
    B2, M2 = 3, 1000
    est2 = jax.random.normal(ks[2], (B2, M2, 2), dtype=jnp.float32)
    lab2 = jax.random.normal(ks[3], (B2, M2, 2), dtype=jnp.float32)
    loss2 = jax.block_until_ready(
        complex_mse_loss(est2, lab2, block_bytes=4096, n_parallel=2))
    ref2 = _reference(est2, lab2)
    assert jnp.allclose(loss2, ref2, rtol=1e-5, atol=1e-6), (loss2, ref2)

    # Case 3: block count (3) not divisible by n_parallel (2) -> exercises the
    # clamped grid-padding block whose mask must zero its contribution.
    B3, M3 = 5, 1000
    est3 = jax.random.normal(ks[4], (B3, M3, 2), dtype=jnp.float32)
    lab3 = jax.random.normal(ks[5], (B3, M3, 2), dtype=jnp.float32)
    loss3 = jax.block_until_ready(
        complex_mse_loss(est3, lab3, block_bytes=4096, n_parallel=2))
    ref3 = _reference(est3, lab3)
    assert jnp.allclose(loss3, ref3, rtol=1e-5, atol=1e-6), (loss3, ref3)

    # Case 4: bf16 inputs streamed natively (cast to f32 inside the kernel).
    est4 = est.astype(jnp.bfloat16)
    lab4 = lab.astype(jnp.bfloat16)
    loss4 = jax.block_until_ready(complex_mse_loss(est4, lab4))
    ref4 = _reference(est4, lab4)
    assert jnp.allclose(loss4, ref4, rtol=1e-5, atol=1e-6), (loss4, ref4)

    print("KERNEL_OK")
</pallas_src>

<mosaic_0001>
module attributes {stable_mosaic.version = 11 : i64} {
  func.func @_complex_mse_kernel(%arg0: i32, %arg1: i32, %arg2: memref<8x512xf32, #tpu.memory_space<vmem>>, %arg3: memref<8x512xf32, #tpu.memory_space<vmem>>, %arg4: memref<1x1x128xf32, #tpu.memory_space<vmem>>, %arg5: memref<8x512xf32, #tpu.memory_space<vmem>>) attributes {dimension_semantics = [#tpu.dimension_semantics<parallel>, #tpu.dimension_semantics<arbitrary>], iteration_bounds = array<i64: 1, 1>, scalar_prefetch = 0 : i64, scratch_operands = 1 : i64, tpu.core_type = #tpu.core_type<tc>, window_params = [{transform_indices = @transform_0, window_bounds = array<i64: 8, 512>}, {transform_indices = @transform_1, window_bounds = array<i64: 8, 512>}, {transform_indices = @transform_2, window_bounds = array<i64: 1, 1, 128>}]} {
    %c0_i32 = arith.constant 0 : i32
    %0 = arith.cmpi eq, %arg1, %c0_i32 : i32
    %1 = arith.extui %0 : i1 to i32
    %c0_i32_0 = arith.constant 0 : i32
    %2 = arith.cmpi ne, %1, %c0_i32_0 : i32
    scf.if %2 {
      %cst_13 = arith.constant 0.000000e+00 : f32
      %30 = vector.broadcast %cst_13 : f32 to vector<8x512xf32>
      %c0_14 = arith.constant 0 : index
      %c0_15 = arith.constant 0 : index
      %31 = vector.load %arg5[%c0_14, %c0_15] : memref<8x512xf32, #tpu.memory_space<vmem>>, vector<8x512xf32>
      tpu.vector_store %arg5[%c0_14, %c0_15], %30 {strides = array<i32>} : memref<8x512xf32, #tpu.memory_space<vmem>>, vector<8x512xf32>,
    } else {
    }
    %c1_i32 = arith.constant 1 : i32
    %3 = arith.muli %arg0, %c1_i32 : i32
    %4 = arith.addi %3, %arg1 : i32
    %c512_i32 = arith.constant 512 : i32
    %5 = arith.muli %4, %c512_i32 : i32
    %c128_i32 = arith.constant 128 : i32
    %6 = arith.subi %c128_i32, %5 : i32
    %7 = tpu.iota {dimensions = array<i32: 1>} : vector<8x512xi32>
    %cst = arith.constant 0.000000e+00 : f32
    %8 = vector.broadcast %cst : f32 to vector<8x512xf32>
    %c0_i32_1 = arith.constant 0 : i32
    %c512_i32_2 = arith.constant 512 : i32
    %9 = arith.muli %c0_i32_1, %c512_i32_2 : i32
    %10 = tpu.assume_multiple %9, 512 : i32
    %c0 = arith.constant 0 : index
    %11 = arith.index_cast %10 : i32 to index
    %12 = vector.load %arg2[%c0, %11] : memref<8x512xf32, #tpu.memory_space<vmem>>, vector<8x512xf32>
    %c0_3 = arith.constant 0 : index
    %13 = arith.index_cast %10 : i32 to index
    %14 = vector.load %arg3[%c0_3, %13] : memref<8x512xf32, #tpu.memory_space<vmem>>, vector<8x512xf32>
    %c512_i32_4 = arith.constant 512 : i32
    %15 = arith.muli %c0_i32_1, %c512_i32_4 : i32
    %16 = arith.subi %6, %15 : i32
    %17 = vector.broadcast %16 : i32 to vector<8x512xi32>
    %18 = arith.cmpi slt, %7, %17 : vector<8x512xi32>
    %19 = arith.subf %12, %14 : vector<8x512xf32>
    %cst_5 = arith.constant 0.000000e+00 : f32
    %20 = vector.broadcast %cst_5 : f32 to vector<8x512xf32>
    %21 = arith.select %18, %19, %20 : vector<8x512xi1>, vector<8x512xf32>
    %22 = arith.mulf %21, %21 : vector<8x512xf32>
    %23 = arith.addf %8, %22 : vector<8x512xf32>
    %c1_i32_6 = arith.constant 1 : i32
    %c0_7 = arith.constant 0 : index
    %c0_8 = arith.constant 0 : index
    %24 = vector.load %arg5[%c0_7, %c0_8] : memref<8x512xf32, #tpu.memory_space<vmem>>, vector<8x512xf32>
    %25 = arith.addf %24, %23 : vector<8x512xf32>
    %c0_9 = arith.constant 0 : index
    %c0_10 = arith.constant 0 : index
    %26 = vector.load %arg5[%c0_9, %c0_10] : memref<8x512xf32, #tpu.memory_space<vmem>>, vector<8x512xf32>
    tpu.vector_store %arg5[%c0_9, %c0_10], %25 {strides = array<i32>} : memref<8x512xf32, #tpu.memory_space<vmem>>, vector<8x512xf32>,
    %c0_i32_11 = arith.constant 0 : i32
    %27 = arith.cmpi eq, %arg1, %c0_i32_11 : i32
    %28 = arith.extui %27 : i1 to i32
    %c0_i32_12 = arith.constant 0 : i32
    %29 = arith.cmpi ne, %28, %c0_i32_12 : i32
    scf.if %29 {
      %c0_13 = arith.constant 0 : index
      %c0_14 = arith.constant 0 : index
      %30 = vector.load %arg5[%c0_13, %c0_14] : memref<8x512xf32, #tpu.memory_space<vmem>>, vector<8x512xf32>
      %31 = vector.extract_strided_slice %30 {offsets = [0, 0], sizes = [8, 128], strides = [1, 1]} : vector<8x512xf32> to vector<8x128xf32>
      %32 = vector.extract_strided_slice %30 {offsets = [0, 128], sizes = [8, 128], strides = [1, 1]} : vector<8x512xf32> to vector<8x128xf32>
      %33 = arith.addf %31, %32 : vector<8x128xf32>
      %34 = vector.extract_strided_slice %30 {offsets = [0, 256], sizes = [8, 128], strides = [1, 1]} : vector<8x512xf32> to vector<8x128xf32>
      %35 = arith.addf %33, %34 : vector<8x128xf32>
      %36 = vector.extract_strided_slice %30 {offsets = [0, 384], sizes = [8, 128], strides = [1, 1]} : vector<8x512xf32> to vector<8x128xf32>
      %37 = arith.addf %35, %36 : vector<8x128xf32>
      %cst_15 = arith.constant dense<0.000000e+00> : vector<128xf32>
      %38 = vector.multi_reduction <add>, %37, %cst_15 [0] : vector<8x128xf32> to vector<128xf32>
      %39 = vector.shape_cast %38 : vector<128xf32> to vector<1x128xf32>
      %cst_16 = arith.constant 0.001953125 : f32
      %40 = vector.broadcast %cst_16 : f32 to vector<1x128xf32>
      %41 = arith.mulf %39, %40 : vector<1x128xf32>
      %c0_17 = arith.constant 0 : index
      %c0_18 = arith.constant 0 : index
      %c0_19 = arith.constant 0 : index
      %42 = vector.load %arg4[%c0_17, %c0_18, %c0_19] : memref<1x1x128xf32, #tpu.memory_space<vmem>>, vector<1x1x128xf32>
      %43 = vector.shape_cast %42 : vector<1x1x128xf32> to vector<1x128xf32>
      %44 = vector.shape_cast %41 : vector<1x128xf32> to vector<1x1x128xf32>
      tpu.vector_store %arg4[%c0_17, %c0_18, %c0_19], %44 {strides = array<i32>} : memref<1x1x128xf32, #tpu.memory_space<vmem>>, vector<1x1x128xf32>,
    } else {
    }
    return
  }
  func.func @transform_0(%arg0: i32, %arg1: i32) -> (i32, i32) {
    %c1_i32 = arith.constant 1 : i32
    %0 = arith.muli %arg0, %c1_i32 : i32
    %1 = arith.addi %0, %arg1 : i32
    %c0_i32 = arith.constant 0 : i32
    %2 = arith.minsi %1, %c0_i32 : i32
    %c0_i32_0 = arith.constant 0 : i32
    %c0_i32_1 = arith.constant 0 : i32
    return %c0_i32_0, %2 : i32, i32
  }
  func.func @transform_1(%arg0: i32, %arg1: i32) -> (i32, i32) {
    %c1_i32 = arith.constant 1 : i32
    %0 = arith.muli %arg0, %c1_i32 : i32
    %1 = arith.addi %0, %arg1 : i32
    %c0_i32 = arith.constant 0 : i32
    %2 = arith.minsi %1, %c0_i32 : i32
    %c0_i32_0 = arith.constant 0 : i32
    %c0_i32_1 = arith.constant 0 : i32
    return %c0_i32_0, %2 : i32, i32
  }
  func.func @transform_2(%arg0: i32, %arg1: i32) -> (i32, i32, i32) {
    %c0_i32 = arith.constant 0 : i32
    %c0_i32_0 = arith.constant 0 : i32
    %c0_i32_1 = arith.constant 0 : i32
    return %arg0, %c0_i32, %c0_i32_0 : i32, i32, i32
  }
}

</mosaic_0001>

<llo_original>
// kernel: tpu_custom_call.1
$region0: #{tpu_custom_call.1}
  #allocation0 [shape = 'u32[]', space=smem, size = 0x4, offset = 0x4, fixed_abs, tag = 'smem constant byte address 0x4 - core index']
  #allocation1 [shape = 'u32[144,128]{1,0:T(1,128)}', space=vmem, size = 0x12000, scoped, tag = 'internal scratch']
  #allocation2 [shape = 'f32[8,512]{1,0:T(8,128)}', space=vmem, size = 0x4000, scoped, tag = 'scratch operand']
  %s0 = inlined_call_operand.hbm [shape: f32[8,128], index: 0, kind: input, shape index: {}]
  %s1 = inlined_call_operand.hbm [shape: f32[8,128], index: 1, kind: input, shape index: {}]
  %s2 = inlined_call_operand.hbm [shape: f32[1,1,128], index: 2, kind: output, shape index: {}]
  %s3 = sld [smem:[#allocation0]]
  $region34: #{tpu_custom_call.1} parent=0
    _
  %s5 = ssub.s32 1, %s3
  %s6 = scalar_select 0, %s5, %s3
  $region1: #{tpu_custom_call.1} parent=0
    #allocation3 [shape = 'u8[16384]{0}', space=vmem, size = 0x4000, scoped, tag = 'input window, operand 0, single buffered']
    #allocation4 [shape = 's32[1]{0}', space=sflag, size = 0x4, scoped, tag = 'scoped memory for tpu_custom_call.1']
    #allocation5 [shape = 's32[1]{0}', space=sflag, size = 0x4, scoped, tag = 'scoped memory for tpu_custom_call.1']
    #allocation6 [shape = 'u8[16384]{0}', space=vmem, size = 0x4000, scoped, tag = 'input window, operand 1, single buffered']
    #allocation7 [shape = 's32[1]{0}', space=sflag, size = 0x4, scoped, tag = 'scoped memory for tpu_custom_call.1']
    #allocation8 [shape = 'u8[512]{0}', space=vmem, size = 0x400, scoped, tag = 'output window, operand 0, single buffered']
    %7 = vsyncpa [#allocation4], 0
    %8 = vsyncpa [#allocation7], 0
    %9 = vsyncpa [#allocation5], 0
    // Predicated region
    $region2: #{tpu_custom_call.1} parent=1 // pred_check
      _
    $region3: #{tpu_custom_call.1} parent=1 // pred_check_branch
      %11 = sbr.rel (0) target = $region5
    $region4: #{tpu_custom_call.1} parent=1 // pred_region
      %s12 = sadd.s32 0, 0
      %p13 = scmp.lt.s32.totalorder %s12, 0
      %s14 = scalar_select %p13, %s12, 0
      %s15 = smul.u32 4, %s14
      %s16 = ssub.s32 1, %s15
      %s17 = smul.u32 128, %s16
      %s19 = ssub.s32 512, %s17
      %20 = vsyncadd [#allocation4], %s19
      %p21 = scmp.ne.s32.totalorder 0, %s17
      %s22 = smul.addr %s15, 128
      %s23 = scalar_lea.hbm %s0, %s22
      %s24 = smul.u32 %s16, 8
      %s25 = sshll.u32 %s24, 4
      %s26 = sshll.u32 [#allocation3], 4
      %s27 = int_to_ptr.vmem [resolvable:$true] %s26
      %29 = dma.hbm_to_vmem [thread:$0]  (%p21), %s23, %s25, %s27, [#allocation4]
    $region5: #{tpu_custom_call.1} parent=1 // pred_fallthru
      _
    // Predicated region
    $region6: #{tpu_custom_call.1} parent=1 // pred_check
      _
    $region7: #{tpu_custom_call.1} parent=1 // pred_check_branch
      %31 = sbr.rel (0) target = $region9
    $region8: #{tpu_custom_call.1} parent=1 // pred_region
      %s32 = sadd.s32 0, 0
      %p33 = scmp.lt.s32.totalorder %s32, 0
      %s34 = scalar_select %p33, %s32, 0
      %s35 = smul.u32 4, %s34
      %s36 = ssub.s32 1, %s35
      %s37 = smul.u32 128, %s36
      %s39 = ssub.s32 512, %s37
      %40 = vsyncadd [#allocation7], %s39
      %p41 = scmp.ne.s32.totalorder 0, %s37
      %s42 = smul.addr %s35, 128
      %s43 = scalar_lea.hbm %s1, %s42
      %s44 = smul.u32 %s36, 8
      %s45 = sshll.u32 %s44, 4
      %s46 = sshll.u32 [#allocation6], 4
      %s47 = int_to_ptr.vmem [resolvable:$true] %s46
      %49 = dma.hbm_to_vmem [thread:$0]  (%p41), %s43, %s45, %s47, [#allocation7]
    $region9: #{tpu_custom_call.1} parent=1 // pred_fallthru
      _
    // Predicated region
    $region10: #{tpu_custom_call.1} parent=1 // pred_check
      _
    $region11: #{tpu_custom_call.1} parent=1 // pred_check_branch
      %51 = sbr.rel (0) target = $region13
    $region12: #{tpu_custom_call.1} parent=1 // pred_region
      %52 = dma.done [#allocation4], 512
    $region13: #{tpu_custom_call.1} parent=1 // pred_fallthru
      _
    // Predicated region
    $region14: #{tpu_custom_call.1} parent=1 // pred_check
      _
    $region15: #{tpu_custom_call.1} parent=1 // pred_check_branch
      %54 = sbr.rel (0) target = $region17
    $region16: #{tpu_custom_call.1} parent=1 // pred_region
      %55 = dma.done [#allocation7], 512
    $region17: #{tpu_custom_call.1} parent=1 // pred_fallthru
      _
    %s56 = sadd.s32 0, 0
    %p57 = scmp.lt.s32.totalorder %s56, 0
    %s58 = scalar_select %p57, %s56, 0
    %s59 = smul.u32 4, %s58
    %s60 = ssub.s32 1, %s59
    %s61 = smul.u32 128, %s60
    %s62 = sadd.s32 0, 0
    %p63 = scmp.lt.s32.totalorder %s62, 0
    %s64 = scalar_select %p63, %s62, 0
    %s65 = smul.u32 4, %s64
    %s66 = ssub.s32 1, %s65
    %s67 = smul.u32 128, %s66
    %p68 = scmp.eq.s32.totalorder 0, 0
    // Predicated region
    $region18: #{tpu_custom_call.1} parent=1 // pred_check
      %p69 = pneg %p68
    $region19: #{tpu_custom_call.1} parent=1 // pred_check_branch
      %71 = sbr.rel (%p69) target = $region21
    $region20: #{tpu_custom_call.1} parent=1 // pred_region
      %72 = vst [vmem:[#allocation2] sm:$0xff] 0.0
      %73 = vst [vmem:[#allocation2 + $0x8] sm:$0xff] 0.0
      %74 = vst [vmem:[#allocation2 + $0x10] sm:$0xff] 0.0
      %75 = vst [vmem:[#allocation2 + $0x18] sm:$0xff] 0.0
    $region21: #{tpu_custom_call.1} parent=1 // pred_fallthru
      _
    %s76 = sadd.s32 0, 0
    %s77 = smul.u32 %s76, 512
    %s78 = ssub.s32 128, %s77
    %v79 = vlaneseq
    %v80 = vand.u32 %v79, 127
    %v81 = vadd.s32 %v80, 128
    %v82 = vadd.s32 %v80, 256
    %v83 = vadd.s32 %v80, 384
    %v84 = vld [vmem:[#allocation3] sm:$0xff]
    %v85 = vld [vmem:[#allocation3 + $0x8] sm:$0xff]
    %v86 = vld [vmem:[#allocation3 + $0x10] sm:$0xff]
    %v87 = vld [vmem:[#allocation3 + $0x18] sm:$0xff]
    %v88 = vld [vmem:[#allocation6] sm:$0xff]
    %v89 = vld [vmem:[#allocation6 + $0x8] sm:$0xff]
    %v90 = vld [vmem:[#allocation6 + $0x10] sm:$0xff]
    %v91 = vld [vmem:[#allocation6 + $0x18] sm:$0xff]
    %v92 = vstv %s78
    %vm93 = vcmp.lt.s32.totalorder %v80, %v92
    %vm94 = vcmp.lt.s32.totalorder %v81, %v92
    %vm95 = vcmp.lt.s32.totalorder %v82, %v92
    %vm96 = vcmp.lt.s32.totalorder %v83, %v92
    %v97 = vsub.f32 %v84, %v88
    %v98 = vsub.f32 %v85, %v89
    %v99 = vsub.f32 %v86, %v90
    %v100 = vsub.f32 %v87, %v91
    %v101 = vsel %vm93, %v97, 0.0
    %v102 = vsel %vm94, %v98, 0.0
    %v103 = vsel %vm95, %v99, 0.0
    %v104 = vsel %vm96, %v100, 0.0
    %v105 = vmul.f32 %v101, %v101
    %v106 = vmul.f32 %v102, %v102
    %v107 = vmul.f32 %v103, %v103
    %v108 = vmul.f32 %v104, %v104
    %v109 = vadd.f32 %v105, 0.0
    %v110 = vadd.f32 %v106, 0.0
    %v111 = vadd.f32 %v107, 0.0
    %v112 = vadd.f32 %v108, 0.0
    %v113 = vld [vmem:[#allocation2] sm:$0xff]
    %v114 = vld [vmem:[#allocation2 + $0x8] sm:$0xff]
    %v115 = vld [vmem:[#allocation2 + $0x10] sm:$0xff]
    %v116 = vld [vmem:[#allocation2 + $0x18] sm:$0xff]
    %v117 = vadd.f32 %v113, %v109
    %v118 = vadd.f32 %v114, %v110
    %v119 = vadd.f32 %v115, %v111
    %v120 = vadd.f32 %v116, %v112
    %121 = vst [vmem:[#allocation2] sm:$0xff] %v117
    %122 = vst [vmem:[#allocation2 + $0x8] sm:$0xff] %v118
    %123 = vst [vmem:[#allocation2 + $0x10] sm:$0xff] %v119
    %124 = vst [vmem:[#allocation2 + $0x18] sm:$0xff] %v120
    // Predicated region
    $region22: #{tpu_custom_call.1} parent=1 // pred_check
      %p125 = pneg %p68
    $region23: #{tpu_custom_call.1} parent=1 // pred_check_branch
      %127 = sbr.rel (%p125) target = $region25
    $region24: #{tpu_custom_call.1} parent=1 // pred_region
      %v128 = vld [vmem:[#allocation2] sm:$0xff]
      %v129 = vld [vmem:[#allocation2 + $0x8] sm:$0xff]
      %v130 = vld [vmem:[#allocation2 + $0x10] sm:$0xff]
      %v131 = vld [vmem:[#allocation2 + $0x18] sm:$0xff]
      %v132 = vadd.f32 %v128, %v129
      %v133 = vadd.f32 %v132, %v130
      %v134 = vadd.f32 %v133, %v131
      %v135 = vrot.slane %v134, 4
      %v136 = vadd.f32 %v134, %v135
      %v137 = vrot.slane %v136, 2
      %v138 = vadd.f32 %v136, %v137
      %v139 = vrot.slane %v138, 1
      %v140 = vadd.f32 %v138, %v139
      %v141 = vmul.f32 %v140, 0.001953125
      %142 = vst [vmem:[#allocation8] sm:$0x1] %v141
    $region25: #{tpu_custom_call.1} parent=1 // pred_fallthru
      _
    // Predicated region
    $region26: #{tpu_custom_call.1} parent=1 // pred_check
      _
    $region27: #{tpu_custom_call.1} parent=1 // pred_check_branch
      %144 = sbr.rel (0) target = $region29
    $region28: #{tpu_custom_call.1} parent=1 // pred_region
      %s146 = ssub.s32 16, 16
      %147 = vsyncadd [#allocation5], %s146
      %s149 = sshll.u32 [#allocation8], 4
      %s150 = int_to_ptr.vmem [resolvable:$true] %s149
      %152 = dma.vmem_to_hbm [thread:$0]  %s150, 16, %s2, [#allocation5]
    $region29: #{tpu_custom_call.1} parent=1 // pred_fallthru
      _
    // Predicated region
    $region30: #{tpu_custom_call.1} parent=1 // pred_check
      _
    $region31: #{tpu_custom_call.1} parent=1 // pred_check_branch
      %154 = sbr.rel (0) target = $region33
    $region32: #{tpu_custom_call.1} parent=1 // pred_region
      %155 = dma.done [#allocation5], 16
    $region33: #{tpu_custom_call.1} parent=1 // pred_fallthru
      _
    %156 = vsyncpa [#allocation4], 1
    %157 = vsyncpa [#allocation7], 1
    %158 = vsyncpa [#allocation5], 1

</llo_original>
